<compile_context>
chip_gen: v7x
topology: tpu7x:2x2x1
jax: 0.10.0
libtpu: 0.0.40
codegen_flags: <defaults>
</compile_context>

<pallas_src>
from functools import partial

import numpy as np
import jax
import jax.numpy as jnp
from jax import lax
from jax.experimental import pallas as pl
from jax.experimental.pallas import tpu as pltpu


# ---------------------------------------------------------------------------
# Fixed GTM constants (phi, sigma), exactly as the PyTorch __init__ builds them.
# ---------------------------------------------------------------------------
def _cartesian_prod(a, b):
    # matches torch.cartesian_prod(a, b): second factor varies fastest
    A, B = np.meshgrid(a, b, indexing="ij")
    return np.stack([A.ravel(), B.ravel()], axis=1)


def _pairwise_sq_dists(a, b):
    diff = a[:, None, :] - b[None, :, :]
    return np.sum(diff * diff, axis=-1)


def build_gtm_constants(out_size=(20, 18), m=12):
    K = out_size[0] * out_size[1]
    ax = np.linspace(-1.0, 1.0, out_size[0])
    bx = np.linspace(-1.0, 1.0, out_size[1])
    matX = _cartesian_prod(ax, bx)                           # (K, 2)
    cm = np.linspace(-1.0 + 1.0 / m, 1.0 - 1.0 / m, m)
    matM = _cartesian_prod(cm, cm)                           # (m^2, 2)

    # sigma = mean over RBF centers of min nonzero pairwise distance
    rbf_w = np.sqrt(_pairwise_sq_dists(matM, matM))
    np.fill_diagonal(rbf_w, np.inf)
    sigma = float(np.mean(np.min(rbf_w, axis=1)))

    d2 = _pairwise_sq_dists(matX, matM)                      # (K, m^2)
    phi = np.exp(-d2 / (2.0 * sigma))
    phi = np.concatenate([phi, np.ones((K, 1))], axis=1)     # add_bias -> (K, m^2+1)
    return jnp.asarray(phi, jnp.float32), sigma, K


def _round_up(x, m):
    return ((x + m - 1) // m) * m


# ---------------------------------------------------------------------------
# Pallas kernel: per batch tile, cross matmul + exp-normalize + responsibilities.
#   yb   : (Kp, D)  = beta * (phi @ W), rows >= K are zero          (constant, fetched once)
#   crow : (1, Kp)  = -beta/2 * ||y_k||^2, -1e30 in pad columns     (constant)
#   ecol : (1, Kp)  one-hot at column K (where s_n is stored)       (constant)
#   x    : (TN, D)  batch tile
#   nhb  : (1,) SMEM scalar = -beta/2
#   out  : (TN, Kp) cols [0,K) = responsibility^T, col K = s_n, rest = 0
# ---------------------------------------------------------------------------
def gtm_kernel(yb_ref, crow_ref, ecol_ref, x_ref, nhb_ref, out_ref):
    x = x_ref[...]                                       # (TN, D)
    yb = yb_ref[...]                                     # (Kp, D)
    crow = crow_ref[...]                                 # (1, Kp)
    ecol = ecol_ref[...]                                 # (1, Kp)
    nhb = nhb_ref[0]                                     # scalar -beta/2

    # beta * (x_n . y_k) in one MXU matmul (contraction over D), no transposes.
    cross = lax.dot_general(x, yb, (((1,), (1,)), ((), ())),
                            preferred_element_type=jnp.float32)      # (TN, Kp)
    x2 = jnp.sum(x * x, axis=1, keepdims=True)                       # (TN, 1)  XLU reduce

    # a = -beta/2 * ||y_k - x_n||^2 ; pad columns get ~ -1e30 -> exp underflows to 0.
    a = cross + nhb * x2 + crow                                      # (TN, Kp)

    m = jnp.max(a, axis=1, keepdims=True)                            # (TN, 1)
    p = jnp.exp(a - m)                                               # EUP
    s = jnp.sum(p, axis=1, keepdims=True)                            # (TN, 1)

    # Exact reciprocal of the (TN, 1) denominator (cheap; avoids the ~1e-3 error of the
    # approximate EUP reciprocal while still replacing the (TN, Kp) divide by a multiply).
    inv_s = 1.0 / s                                                  # (TN, 1)
    # responsibilities in cols [0, K) (pad cols are exactly 0), s_n folded into col K:
    out_ref[...] = p * inv_s + s * ecol


@partial(jax.jit, static_argnames=("K",))
def gtm_forward(t, phi, W, beta, K):
    """Mirrors GTM.forward (method='full_prob'): returns (-log_likelihood(t), transform(t))."""
    N, D = t.shape
    beta = jnp.asarray(beta, jnp.float32)

    # ---- hoisted, batch-independent constants (plain XLA, computed once per call) ----
    y = jnp.dot(phi, W, preferred_element_type=jnp.float32)          # (K, D)
    Kp = _round_up(K + 1, 128)                                       # lane-dense, +1 col for s
    yb = jnp.pad(beta * y, ((0, Kp - K), (0, 0)))                    # zero pad rows
    crow = jnp.pad((-0.5 * beta * jnp.sum(y * y, axis=1))[None, :],
                   ((0, 0), (0, Kp - K)), constant_values=-1e30)     # (1, Kp)
    ecol = jnp.zeros((1, Kp), jnp.float32).at[0, K].set(1.0)         # one-hot for the s column
    nhb = jnp.reshape(-0.5 * beta, (1,)).astype(jnp.float32)         # SMEM scalar

    # ---- batch tiling (double-buffered, parallel grid -> both cores on v7x) ----
    TN = min(1024, _round_up(N, 8))
    Np = _round_up(N, TN)
    x = jnp.pad(t.astype(jnp.float32), ((0, Np - N), (0, 0)))

    out = pl.pallas_call(
        gtm_kernel,
        out_shape=jax.ShapeDtypeStruct((Np, Kp), jnp.float32),
        grid_spec=pltpu.PrefetchScalarGridSpec(
            num_scalar_prefetch=0,
            grid=(Np // TN,),
            in_specs=[
                pl.BlockSpec((Kp, D), lambda i: (0, 0)),               # yb (constant)
                pl.BlockSpec((1, Kp), lambda i: (0, 0)),               # crow (constant)
                pl.BlockSpec((1, Kp), lambda i: (0, 0)),               # ecol (constant)
                pl.BlockSpec((TN, D), lambda i: (i, 0)),               # x tile
                pl.BlockSpec(memory_space=pltpu.MemorySpace.SMEM),     # -beta/2 scalar
            ],
            out_specs=pl.BlockSpec((TN, Kp), lambda i: (i, 0)),
        ),
        compiler_params=pltpu.CompilerParams(
            dimension_semantics=("parallel",)),
    )(yb, crow, ecol, x, nhb)

    rt = out[:N, :K]                 # transform (N, K), method='full_prob'
    s = out[:N, K]                   # softmax denominators (exact)

    # log_likelihood (replicates the torch code, which drops the exp-normalize max term):
    #   L = mean_n [ log( (beta/2pi)^(D/2) * s_n / K ) ]
    k1_log = (D / 2.0) * jnp.log(beta / (2.0 * jnp.pi))
    ll = jnp.mean(jnp.log(s)) + k1_log - jnp.log(jnp.float32(K))
    return -ll, rt


if __name__ == "__main__":
    # Small, GTM-consistent shapes: defaults out_size=(20,18), m=12; D=32 features, N=8 samples.
    input_size = 32
    out_size = (20, 18)
    m = 12
    N = 8

    phi, sigma, K = build_gtm_constants(out_size, m)
    M1 = m * m + 1

    # Deterministic synthetic parameters (the "random initialized" branch of __init__):
    #   W ~ N(0,1) with shape (m^2+1, D), beta = 1.0
    key = jax.random.PRNGKey(0)
    kw, kt = jax.random.split(key)
    W = jax.random.normal(kw, (M1, input_size), dtype=jnp.float32)
    beta = 1.0
    t = jax.random.normal(kt, (N, input_size), dtype=jnp.float32)

    neg_ll, transform = gtm_forward(t, phi, W, beta, K)
    neg_ll = jax.block_until_ready(neg_ll)
    transform = jax.block_until_ready(transform)

    # Pure-JAX reference (direct squared-distance, f32) for a sanity comparison.
    y_ref = phi @ W
    d2_ref = jnp.sum((t[:, None, :] - y_ref[None, :, :]) ** 2, axis=-1)      # (N, K)
    a_ref = -0.5 * beta * d2_ref
    m_ref = jnp.max(a_ref, axis=1, keepdims=True)
    p_ref = jnp.exp(a_ref - m_ref)
    s_ref = jnp.sum(p_ref, axis=1, keepdims=True)
    rt_ref = p_ref / s_ref
    nll_ref = -(jnp.mean(jnp.log(s_ref[:, 0]))
                + (input_size / 2.0) * jnp.log(beta / (2.0 * jnp.pi))
                - jnp.log(jnp.float32(K)))

    row_sums = np.asarray(jnp.sum(transform, axis=1))
    assert transform.shape == (N, K)
    assert np.allclose(row_sums, 1.0, atol=2e-3), row_sums
    assert np.isfinite(float(neg_ll))
    assert np.allclose(np.asarray(transform), np.asarray(rt_ref), atol=2e-3)
    assert abs(float(neg_ll) - float(nll_ref)) < 1e-2, (float(neg_ll), float(nll_ref))

    print("KERNEL_OK")
</pallas_src>

<mosaic_0001>
module attributes {stable_mosaic.version = 11 : i64} {
  func.func @gtm_kernel(%arg0: i32, %arg1: memref<384x32xf32, #tpu.memory_space<vmem>>, %arg2: memref<1x384xf32, #tpu.memory_space<vmem>>, %arg3: memref<1x384xf32, #tpu.memory_space<vmem>>, %arg4: memref<8x32xf32, #tpu.memory_space<vmem>>, %arg5: memref<1xf32, #tpu.memory_space<smem>>, %arg6: memref<8x384xf32, #tpu.memory_space<vmem>>) attributes {dimension_semantics = [#tpu.dimension_semantics<parallel>], iteration_bounds = array<i64: 1>, scalar_prefetch = 0 : i64, scratch_operands = 0 : i64, tpu.core_type = #tpu.core_type<tc>, window_params = [{pipeline_mode = #tpu.pipeline_mode<synchronous>, transform_indices = @transform_0, window_bounds = array<i64: 384, 32>}, {pipeline_mode = #tpu.pipeline_mode<synchronous>, transform_indices = @transform_1, window_bounds = array<i64: 1, 384>}, {pipeline_mode = #tpu.pipeline_mode<synchronous>, transform_indices = @transform_2, window_bounds = array<i64: 1, 384>}, {transform_indices = @transform_3, window_bounds = array<i64: 8, 32>}, {transform_indices = @transform_4, window_bounds = array<i64: 1>}, {transform_indices = @transform_5, window_bounds = array<i64: 8, 384>}]} {
    %c0 = arith.constant 0 : index
    %c0_0 = arith.constant 0 : index
    %0 = vector.load %arg4[%c0, %c0_0] : memref<8x32xf32, #tpu.memory_space<vmem>>, vector<8x32xf32>
    %c0_1 = arith.constant 0 : index
    %c0_2 = arith.constant 0 : index
    %1 = vector.load %arg1[%c0_1, %c0_2] : memref<384x32xf32, #tpu.memory_space<vmem>>, vector<384x32xf32>
    %c0_3 = arith.constant 0 : index
    %c0_4 = arith.constant 0 : index
    %2 = vector.load %arg2[%c0_3, %c0_4] : memref<1x384xf32, #tpu.memory_space<vmem>>, vector<1x384xf32>
    %c0_5 = arith.constant 0 : index
    %c0_6 = arith.constant 0 : index
    %3 = vector.load %arg3[%c0_5, %c0_6] : memref<1x384xf32, #tpu.memory_space<vmem>>, vector<1x384xf32>
    %c0_7 = arith.constant 0 : index
    %4 = memref.load %arg5[%c0_7] : memref<1xf32, #tpu.memory_space<smem>>
    %cst = arith.constant dense<0.000000e+00> : vector<8x384xf32>
    %5 = tpu.matmul %0, %1, %cst {dimension_numbers = #tpu.dot_dimension_numbers<[1], [1], [0], [0], [0, 0, 1, 0], [], []>} : vector<8x32xf32>, vector<384x32xf32>, vector<8x384xf32> -> vector<8x384xf32>
    %6 = arith.mulf %0, %0 : vector<8x32xf32>
    %cst_8 = arith.constant dense<0.000000e+00> : vector<8xf32>
    %7 = vector.multi_reduction <add>, %6, %cst_8 [1] : vector<8x32xf32> to vector<8xf32>
    %8 = vector.shape_cast %7 : vector<8xf32> to vector<8x1xf32>
    %9 = vector.broadcast %4 : f32 to vector<8x1xf32>
    %10 = arith.mulf %9, %8 : vector<8x1xf32>
    %11 = vector.broadcast %10 : vector<8x1xf32> to vector<8x384xf32>
    %12 = arith.addf %5, %11 : vector<8x384xf32>
    %13 = vector.broadcast %2 : vector<1x384xf32> to vector<8x384xf32>
    %14 = arith.addf %12, %13 : vector<8x384xf32>
    %cst_9 = arith.constant dense<0xFF800000> : vector<8xf32>
    %15 = vector.multi_reduction <maximumf>, %14, %cst_9 [1] : vector<8x384xf32> to vector<8xf32>
    %16 = vector.shape_cast %15 : vector<8xf32> to vector<8x1xf32>
    %17 = vector.broadcast %16 : vector<8x1xf32> to vector<8x384xf32>
    %18 = arith.subf %14, %17 : vector<8x384xf32>
    %19 = math.exp %18 : vector<8x384xf32>
    %cst_10 = arith.constant dense<0.000000e+00> : vector<8xf32>
    %20 = vector.multi_reduction <add>, %19, %cst_10 [1] : vector<8x384xf32> to vector<8xf32>
    %21 = vector.shape_cast %20 : vector<8xf32> to vector<8x1xf32>
    %cst_11 = arith.constant 1.000000e+00 : f32
    %22 = vector.broadcast %cst_11 : f32 to vector<8x1xf32>
    %23 = arith.divf %22, %21 : vector<8x1xf32>
    %24 = vector.broadcast %23 : vector<8x1xf32> to vector<8x384xf32>
    %25 = arith.mulf %19, %24 : vector<8x384xf32>
    %26 = vector.broadcast %21 : vector<8x1xf32> to vector<8x384xf32>
    %27 = vector.broadcast %3 : vector<1x384xf32> to vector<8x384xf32>
    %28 = arith.mulf %26, %27 : vector<8x384xf32>
    %29 = arith.addf %25, %28 : vector<8x384xf32>
    %c0_12 = arith.constant 0 : index
    %c0_13 = arith.constant 0 : index
    %30 = vector.load %arg6[%c0_12, %c0_13] : memref<8x384xf32, #tpu.memory_space<vmem>>, vector<8x384xf32>
    tpu.vector_store %arg6[%c0_12, %c0_13], %29 {strides = array<i32>} : memref<8x384xf32, #tpu.memory_space<vmem>>, vector<8x384xf32>,
    return
  }
  func.func @transform_0(%arg0: i32) -> (i32, i32) {
    %c0_i32 = arith.constant 0 : i32
    %c0_i32_0 = arith.constant 0 : i32
    %c0_i32_1 = arith.constant 0 : i32
    return %c0_i32, %c0_i32_0 : i32, i32
  }
  func.func @transform_1(%arg0: i32) -> (i32, i32) {
    %c0_i32 = arith.constant 0 : i32
    %c0_i32_0 = arith.constant 0 : i32
    %c0_i32_1 = arith.constant 0 : i32
    return %c0_i32, %c0_i32_0 : i32, i32
  }
  func.func @transform_2(%arg0: i32) -> (i32, i32) {
    %c0_i32 = arith.constant 0 : i32
    %c0_i32_0 = arith.constant 0 : i32
    %c0_i32_1 = arith.constant 0 : i32
    return %c0_i32, %c0_i32_0 : i32, i32
  }
  func.func @transform_3(%arg0: i32) -> (i32, i32) {
    %c0_i32 = arith.constant 0 : i32
    %c0_i32_0 = arith.constant 0 : i32
    return %arg0, %c0_i32 : i32, i32
  }
  func.func @transform_4(%arg0: i32) -> i32 {
    %c0_i32 = arith.constant 0 : i32
    %c0_i32_0 = arith.constant 0 : i32
    return %c0_i32 : i32
  }
  func.func @transform_5(%arg0: i32) -> (i32, i32) {
    %c0_i32 = arith.constant 0 : i32
    %c0_i32_0 = arith.constant 0 : i32
    return %arg0, %c0_i32 : i32, i32
  }
}

</mosaic_0001>

<llo_original>
// kernel: gtm_forward.1
$region0: #{gtm_forward.1}
  #allocation0 [shape = 'u32[]', space=smem, size = 0x4, offset = 0x4, fixed_abs, tag = 'smem constant byte address 0x4 - core index']
  #allocation1 [shape = 'u32[144,128]{1,0:T(1,128)}', space=vmem, size = 0x12000, scoped, tag = 'internal scratch']
  #allocation2 [shape = 'f32[1]{0:T(128)S(6)}', space=smem, size = 0x200, scoped, tag = 'scoped memory for gtm_forward.1']
  %s0 = inlined_call_operand.vmem [shape: f32[384,32], index: 0, kind: input, shape index: {}]
  %s1 = inlined_call_operand.vmem [shape: f32[1,384], index: 1, kind: input, shape index: {}]
  %s2 = inlined_call_operand.vmem [shape: f32[1,384], index: 2, kind: input, shape index: {}]
  %s3 = inlined_call_operand.vmem [shape: f32[8,32], index: 3, kind: input, shape index: {}]
  %s4 = inlined_call_operand.<no memory space> [shape: f32[1], index: 4, kind: input, shape index: {}]
  %s5 = inlined_call_operand.vmem [shape: f32[8,384], index: 5, kind: output, shape index: {}]
  %s6 = sld [smem:[#allocation0]]
  $region30: #{gtm_forward.1} parent=0
    _
  %s8 = ssub.s32 1, %s6
  %s9 = scalar_select 0, %s8, %s6
  %10 = sst [smem:[#allocation2]] %s4
  // Predicated region
  $region2: #{gtm_forward.1} parent=0 // pred_check
    _
  $region3: #{gtm_forward.1} parent=0 // pred_check_branch
    %12 = sbr.rel (0) target = $region5
  $region4: #{gtm_forward.1} parent=0 // pred_region
    _
  $region5: #{gtm_forward.1} parent=0 // pred_fallthru
    _
  // Predicated region
  $region6: #{gtm_forward.1} parent=0 // pred_check
    _
  $region7: #{gtm_forward.1} parent=0 // pred_check_branch
    %14 = sbr.rel (0) target = $region9
  $region8: #{gtm_forward.1} parent=0 // pred_region
    _
  $region9: #{gtm_forward.1} parent=0 // pred_fallthru
    _
  // Predicated region
  $region10: #{gtm_forward.1} parent=0 // pred_check
    _
  $region11: #{gtm_forward.1} parent=0 // pred_check_branch
    %16 = sbr.rel (0) target = $region13
  $region12: #{gtm_forward.1} parent=0 // pred_region
    _
  $region13: #{gtm_forward.1} parent=0 // pred_fallthru
    _
  // Predicated region
  $region14: #{gtm_forward.1} parent=0 // pred_check
    _
  $region15: #{gtm_forward.1} parent=0 // pred_check_branch
    %18 = sbr.rel (0) target = $region17
  $region16: #{gtm_forward.1} parent=0 // pred_region
    _
  $region17: #{gtm_forward.1} parent=0 // pred_fallthru
    _
  // Predicated region
  $region18: #{gtm_forward.1} parent=0 // pred_check
    _
  $region19: #{gtm_forward.1} parent=0 // pred_check_branch
    %20 = sbr.rel (0) target = $region21
  $region20: #{gtm_forward.1} parent=0 // pred_region
    _
  $region21: #{gtm_forward.1} parent=0 // pred_fallthru
    _
  %v21 = vld [vmem:[%s3] sm:$0xff]
  %v22 = vld [vmem:[%s0] sm:$0xff]
  %v23 = vld [vmem:[%s0 + $0x8] sm:$0xff]
  %v24 = vld [vmem:[%s0 + $0x10] sm:$0xff]
  %v25 = vld [vmem:[%s0 + $0x18] sm:$0xff]
  %v26 = vld [vmem:[%s0 + $0x20] sm:$0xff]
  %v27 = vld [vmem:[%s0 + $0x28] sm:$0xff]
  %v28 = vld [vmem:[%s0 + $0x30] sm:$0xff]
  %v29 = vld [vmem:[%s0 + $0x38] sm:$0xff]
  %v30 = vld [vmem:[%s0 + $0x40] sm:$0xff]
  %v31 = vld [vmem:[%s0 + $0x48] sm:$0xff]
  %v32 = vld [vmem:[%s0 + $0x50] sm:$0xff]
  %v33 = vld [vmem:[%s0 + $0x58] sm:$0xff]
  %v34 = vld [vmem:[%s0 + $0x60] sm:$0xff]
  %v35 = vld [vmem:[%s0 + $0x68] sm:$0xff]
  %v36 = vld [vmem:[%s0 + $0x70] sm:$0xff]
  %v37 = vld [vmem:[%s0 + $0x78] sm:$0xff]
  %v38 = vld [vmem:[%s0 + $0x80] sm:$0xff]
  %v39 = vld [vmem:[%s0 + $0x88] sm:$0xff]
  %v40 = vld [vmem:[%s0 + $0x90] sm:$0xff]
  %v41 = vld [vmem:[%s0 + $0x98] sm:$0xff]
  %v42 = vld [vmem:[%s0 + $0xa0] sm:$0xff]
  %v43 = vld [vmem:[%s0 + $0xa8] sm:$0xff]
  %v44 = vld [vmem:[%s0 + $0xb0] sm:$0xff]
  %v45 = vld [vmem:[%s0 + $0xb8] sm:$0xff]
  %v46 = vld [vmem:[%s0 + $0xc0] sm:$0xff]
  %v47 = vld [vmem:[%s0 + $0xc8] sm:$0xff]
  %v48 = vld [vmem:[%s0 + $0xd0] sm:$0xff]
  %v49 = vld [vmem:[%s0 + $0xd8] sm:$0xff]
  %v50 = vld [vmem:[%s0 + $0xe0] sm:$0xff]
  %v51 = vld [vmem:[%s0 + $0xe8] sm:$0xff]
  %v52 = vld [vmem:[%s0 + $0xf0] sm:$0xff]
  %v53 = vld [vmem:[%s0 + $0xf8] sm:$0xff]
  %v54 = vld [vmem:[%s0 + $0x100] sm:$0xff]
  %v55 = vld [vmem:[%s0 + $0x108] sm:$0xff]
  %v56 = vld [vmem:[%s0 + $0x110] sm:$0xff]
  %v57 = vld [vmem:[%s0 + $0x118] sm:$0xff]
  %v58 = vld [vmem:[%s0 + $0x120] sm:$0xff]
  %v59 = vld [vmem:[%s0 + $0x128] sm:$0xff]
  %v60 = vld [vmem:[%s0 + $0x130] sm:$0xff]
  %v61 = vld [vmem:[%s0 + $0x138] sm:$0xff]
  %v62 = vld [vmem:[%s0 + $0x140] sm:$0xff]
  %v63 = vld [vmem:[%s0 + $0x148] sm:$0xff]
  %v64 = vld [vmem:[%s0 + $0x150] sm:$0xff]
  %v65 = vld [vmem:[%s0 + $0x158] sm:$0xff]
  %v66 = vld [vmem:[%s0 + $0x160] sm:$0xff]
  %v67 = vld [vmem:[%s0 + $0x168] sm:$0xff]
  %v68 = vld [vmem:[%s0 + $0x170] sm:$0xff]
  %v69 = vld [vmem:[%s0 + $0x178] sm:$0xff]
  %v70 = vld [vmem:[%s1] sm:$0x7]
  %v71 = vld [vmem:[%s2] sm:$0x7]
  %s72 = sld [smem:[#allocation2]]
  %v73 = vmul.f32 %v21, %v21
  %vm74 = vcmask 261120
  %v75 = vsel %vm74, %v73, 0.0
  %76 = vadd.xlane.f32.xlu0 %v75
  %v77 = vpop.xlane.xlu0 %76
  %v78 = vstv %s72
  %v79 = vmul.f32 %v78, %v77
  %v81 = vsel %vm74, %v21, 0
  %v84 = vsel %vm74, %v22, 0
  %v87 = vsel %vm74, %v23, 0
  %v90 = vsel %vm74, %v24, 0
  %v93 = vsel %vm74, %v25, 0
  %v96 = vsel %vm74, %v26, 0
  %v99 = vsel %vm74, %v27, 0
  %v102 = vsel %vm74, %v28, 0
  %v105 = vsel %vm74, %v29, 0
  %v108 = vsel %vm74, %v30, 0
  %v111 = vsel %vm74, %v31, 0
  %v114 = vsel %vm74, %v32, 0
  %v117 = vsel %vm74, %v33, 0
  %v120 = vsel %vm74, %v34, 0
  %v123 = vsel %vm74, %v35, 0
  %v126 = vsel %vm74, %v36, 0
  %v129 = vsel %vm74, %v37, 0
  %v132 = vsel %vm74, %v38, 0
  %v135 = vsel %vm74, %v39, 0
  %v138 = vsel %vm74, %v40, 0
  %v141 = vsel %vm74, %v41, 0
  %v144 = vsel %vm74, %v42, 0
  %v147 = vsel %vm74, %v43, 0
  %v150 = vsel %vm74, %v44, 0
  %v153 = vsel %vm74, %v45, 0
  %v156 = vsel %vm74, %v46, 0
  %v159 = vsel %vm74, %v47, 0
  %v162 = vsel %vm74, %v48, 0
  %v165 = vsel %vm74, %v49, 0
  %v168 = vsel %vm74, %v50, 0
  %v171 = vsel %vm74, %v51, 0
  %v174 = vsel %vm74, %v52, 0
  %v177 = vsel %vm74, %v53, 0
  %v180 = vsel %vm74, %v54, 0
  %v183 = vsel %vm74, %v55, 0
  %v186 = vsel %vm74, %v56, 0
  %v189 = vsel %vm74, %v57, 0
  %v192 = vsel %vm74, %v58, 0
  %v195 = vsel %vm74, %v59, 0
  %v198 = vsel %vm74, %v60, 0
  %v201 = vsel %vm74, %v61, 0
  %v204 = vsel %vm74, %v62, 0
  %v207 = vsel %vm74, %v63, 0
  %v210 = vsel %vm74, %v64, 0
  %v213 = vsel %vm74, %v65, 0
  %v216 = vsel %vm74, %v66, 0
  %v219 = vsel %vm74, %v67, 0
  %v222 = vsel %vm74, %v68, 0
  %v225 = vsel %vm74, %v69, 0
  %227 = vmatprep.subr.mxu0 0.0
  %228 = vmatpush1.xpose.msra.mxu0 %v84
  %229 = vmatprep.subr.mxu0 0.0
  %230 = vmatpush1.xpose.msra.mxu0 %v87
  %231 = vmatprep.subr.mxu0 0.0
  %232 = vmatpush1.xpose.msra.mxu0 %v90
  %233 = vmatprep.subr.mxu0 0.0
  %234 = vmatpush1.xpose.msra.mxu0 %v93
  %235 = vmatprep.subr.mxu0 0.0
  %236 = vmatpush1.xpose.msra.mxu0 %v96
  %237 = vmatprep.subr.mxu0 0.0
  %238 = vmatpush1.xpose.msra.mxu0 %v99
  %239 = vmatprep.subr.mxu0 0.0
  %240 = vmatpush1.xpose.msra.mxu0 %v102
  %241 = vmatprep.subr.mxu0 0.0
  %242 = vmatpush1.xpose.msra.mxu0 %v105
  %243 = vmatprep.subr.mxu0 0.0
  %244 = vmatpush1.xpose.msra.mxu0 %v108
  %245 = vmatprep.subr.mxu0 0.0
  %246 = vmatpush1.xpose.msra.mxu0 %v111
  %247 = vmatprep.subr.mxu0 0.0
  %248 = vmatpush1.xpose.msra.mxu0 %v114
  %249 = vmatprep.subr.mxu0 0.0
  %250 = vmatpush1.xpose.msra.mxu0 %v117
  %251 = vmatprep.subr.mxu0 0.0
  %252 = vmatpush1.xpose.msra.mxu0 %v120
  %253 = vmatprep.subr.mxu0 0.0
  %254 = vmatpush1.xpose.msra.mxu0 %v123
  %255 = vmatprep.subr.mxu0 0.0
  %256 = vmatpush1.xpose.msra.mxu0 %v126
  %257 = vmatprep.subr.mxu0 0.0
  %258 = vmatpush1.xpose.msra.mxu0 %v129
  %259 = vmatprep.subr.mxu0 0.0
  %260 = vmatpush1.xpose.msra.mxu0 %v132
  %261 = vmatprep.subr.mxu0 0.0
  %262 = vmatpush1.xpose.msra.mxu0 %v135
  %263 = vmatprep.subr.mxu0 0.0
  %264 = vmatpush1.xpose.msra.mxu0 %v138
  %265 = vmatprep.subr.mxu0 0.0
  %266 = vmatpush1.xpose.msra.mxu0 %v141
  %267 = vmatprep.subr.mxu0 0.0
  %268 = vmatpush1.xpose.msra.mxu0 %v144
  %269 = vmatprep.subr.mxu0 0.0
  %270 = vmatpush1.xpose.msra.mxu0 %v147
  %271 = vmatprep.subr.mxu0 0.0
  %272 = vmatpush1.xpose.msra.mxu0 %v150
  %273 = vmatprep.subr.mxu0 0.0
  %274 = vmatpush1.xpose.msra.mxu0 %v153
  %275 = vmatprep.subr.mxu0 0.0
  %276 = vmatpush1.xpose.msra.mxu0 %v156
  %277 = vmatprep.subr.mxu0 0.0
  %278 = vmatpush1.xpose.msra.mxu0 %v159
  %279 = vmatprep.subr.mxu0 0.0
  %280 = vmatpush1.xpose.msra.mxu0 %v162
  %281 = vmatprep.subr.mxu0 0.0
  %282 = vmatpush1.xpose.msra.mxu0 %v165
  %283 = vmatprep.subr.mxu0 0.0
  %284 = vmatpush1.xpose.msra.mxu0 %v168
  %285 = vmatprep.subr.mxu0 0.0
  %286 = vmatpush1.xpose.msra.mxu0 %v171
  %287 = vmatprep.subr.mxu0 0.0
  %288 = vmatpush1.xpose.msra.mxu0 %v174
  %289 = vmatprep.subr.mxu0 0.0
  %290 = vmatpush1.xpose.msra.mxu0 %v177
  %291 = vmatprep.mubr.f32.mxu0 0.0
  %292 = vmatmul.mubr.f32.gmra.mrb[0].mxu0 %v81
  %v293 = vpop.f32.mrb[0].mxu0
  %v294 = vadd.f32 %v79, %v293
  %v295 = vpop.f32.mrb[0].mxu0
  %v296 = vadd.f32 %v79, %v295
  %297 = vdwg.mxu0
  %298 = vmatprep.subr.mxu0 0.0
  %299 = vmatpush1.xpose.msra.mxu0 %v180
  %300 = vmatprep.subr.mxu0 0.0
  %301 = vmatpush1.xpose.msra.mxu0 %v183
  %302 = vmatprep.subr.mxu0 0.0
  %303 = vmatpush1.xpose.msra.mxu0 %v186
  %304 = vmatprep.subr.mxu0 0.0
  %305 = vmatpush1.xpose.msra.mxu0 %v189
  %306 = vmatprep.subr.mxu0 0.0
  %307 = vmatpush1.xpose.msra.mxu0 %v192
  %308 = vmatprep.subr.mxu0 0.0
  %309 = vmatpush1.xpose.msra.mxu0 %v195
  %310 = vmatprep.subr.mxu0 0.0
  %311 = vmatpush1.xpose.msra.mxu0 %v198
  %312 = vmatprep.subr.mxu0 0.0
  %313 = vmatpush1.xpose.msra.mxu0 %v201
  %314 = vmatprep.subr.mxu0 0.0
  %315 = vmatpush1.xpose.msra.mxu0 %v204
  %316 = vmatprep.subr.mxu0 0.0
  %317 = vmatpush1.xpose.msra.mxu0 %v207
  %318 = vmatprep.subr.mxu0 0.0
  %319 = vmatpush1.xpose.msra.mxu0 %v210
  %320 = vmatprep.subr.mxu0 0.0
  %321 = vmatpush1.xpose.msra.mxu0 %v213
  %322 = vmatprep.subr.mxu0 0.0
  %323 = vmatpush1.xpose.msra.mxu0 %v216
  %324 = vmatprep.subr.mxu0 0.0
  %325 = vmatpush1.xpose.msra.mxu0 %v219
  %326 = vmatprep.subr.mxu0 0.0
  %327 = vmatpush1.xpose.msra.mxu0 %v222
  %328 = vmatprep.subr.mxu0 0.0
  %329 = vmatpush1.xpose.msra.mxu0 %v225
  %330 = vmatprep.subr.mxu0 0.0
  %331 = vmatpush1.xpose.msra.mxu0 0.0
  %332 = vmatprep.subr.mxu0 0.0
  %333 = vmatpush1.xpose.msra.mxu0 0.0
  %334 = vmatprep.subr.mxu0 0.0
  %335 = vmatpush1.xpose.msra.mxu0 0.0
  %336 = vmatprep.subr.mxu0 0.0
  %337 = vmatpush1.xpose.msra.mxu0 0.0
  %338 = vmatprep.subr.mxu0 0.0
  %339 = vmatpush1.xpose.msra.mxu0 0.0
  %340 = vmatprep.subr.mxu0 0.0
  %341 = vmatpush1.xpose.msra.mxu0 0.0
  %342 = vmatprep.subr.mxu0 0.0
  %343 = vmatpush1.xpose.msra.mxu0 0.0
  %344 = vmatprep.subr.mxu0 0.0
  %345 = vmatpush1.xpose.msra.mxu0 0.0
  %346 = vmatprep.subr.mxu0 0.0
  %347 = vmatpush1.xpose.msra.mxu0 0.0
  %348 = vmatprep.subr.mxu0 0.0
  %349 = vmatpush1.xpose.msra.mxu0 0.0
  %350 = vmatprep.subr.mxu0 0.0
  %351 = vmatpush1.xpose.msra.mxu0 0.0
  %352 = vmatprep.subr.mxu0 0.0
  %353 = vmatpush1.xpose.msra.mxu0 0.0
  %354 = vmatprep.subr.mxu0 0.0
  %355 = vmatpush1.xpose.msra.mxu0 0.0
  %356 = vmatprep.subr.mxu0 0.0
  %357 = vmatpush1.xpose.msra.mxu0 0.0
  %358 = vmatprep.subr.mxu0 0.0
  %359 = vmatpush1.xpose.msra.mxu0 0.0
  %360 = vmatprep.subr.mxu0 0.0
  %361 = vmatpush1.xpose.msra.mxu0 0.0
  %362 = vmatprep.mubr.f32.mxu0 0.0
  %363 = vmatmul.mubr.f32.gmra.mrb[0].mxu0 %v81
  %v364 = vpop.f32.mrb[0].mxu0
  %v365 = vadd.f32 %v79, %v364
  %v366 = vpop.f32.mrb[0].mxu0
  %367 = vdwg.mxu0
  %v369 = vlaneseq
  %v370 = vshrl.u32 %v369, 7
  %v371 = vsub.s32 0, %v370
  %v372 = vrot.slane %v70, %v371
  %v373 = vlaneseq
  %v374 = vshrl.u32 %v373, 7
  %v375 = vsub.s32 1, %v374
  %v376 = vrot.slane %v70, %v375
  %v377 = vlaneseq
  %v378 = vshrl.u32 %v377, 7
  %v379 = vsub.s32 2, %v378
  %v380 = vrot.slane %v70, %v379
  %v384 = vadd.f32 %v294, %v372
  %v385 = vadd.f32 %v296, %v376
  %v386 = vadd.f32 %v365, %v380
  %v387 = vmax.f32 %v384, %v385
  %v388 = vmax.f32 %v387, %v386
  %389 = vmax.xlane.f32.xlu0 %v388
  %v390 = vpop.xlane.xlu0 %389
  %v391 = vsub.f32 %v384, %v390
  %v392 = vsub.f32 %v385, %v390
  %v393 = vsub.f32 %v386, %v390
  %v394 = vmul.f32 %v391, 1.442695
  %v395 = vpow.pop %v394
  %v396 = vmul.f32 %v392, 1.442695
  %v397 = vpow.pop %v396
  %v398 = vmul.f32 %v393, 1.442695
  %v399 = vpow.pop %v398
  %v400 = vadd.f32 %v395, %v397
  %v401 = vadd.f32 %v400, %v399
  %402 = vadd.xlane.f32.xlu0 %v401
  %v403 = vpop.xlane.xlu0 %402
  %v404 = vrcp.pop %v403
  %v405 = vmul.f32 1.0, %v404
  %v406 = vmul.f32 %v395, %v405
  %v407 = vmul.f32 %v397, %v405
  %v408 = vmul.f32 %v399, %v405
  %v410 = vlaneseq
  %v411 = vshrl.u32 %v410, 7
  %v412 = vsub.s32 0, %v411
  %v413 = vrot.slane %v71, %v412
  %v414 = vlaneseq
  %v415 = vshrl.u32 %v414, 7
  %v416 = vsub.s32 1, %v415
  %v417 = vrot.slane %v71, %v416
  %v418 = vlaneseq
  %v419 = vshrl.u32 %v418, 7
  %v420 = vsub.s32 2, %v419
  %v421 = vrot.slane %v71, %v420
  %v425 = vmul.f32 %v403, %v413
  %v426 = vmul.f32 %v403, %v417
  %v427 = vmul.f32 %v403, %v421
  %v428 = vadd.f32 %v406, %v425
  %v429 = vadd.f32 %v407, %v426
  %v430 = vadd.f32 %v408, %v427
  %431 = vst [vmem:[%s5] sm:$0xff] %v428
  %432 = vst [vmem:[%s5 + $0x8] sm:$0xff] %v429
  %433 = vst [vmem:[%s5 + $0x10] sm:$0xff] %v430
  // Predicated region
  $region22: #{gtm_forward.1} parent=0 // pred_check
    _
  $region23: #{gtm_forward.1} parent=0 // pred_check_branch
    %435 = sbr.rel (0) target = $region25
  $region24: #{gtm_forward.1} parent=0 // pred_region
    _
  $region25: #{gtm_forward.1} parent=0 // pred_fallthru
    _
  // Predicated region
  $region26: #{gtm_forward.1} parent=0 // pred_check
    _
  $region27: #{gtm_forward.1} parent=0 // pred_check_branch
    %437 = sbr.rel (0) target = $region29
  $region28: #{gtm_forward.1} parent=0 // pred_region
    _
  $region29: #{gtm_forward.1} parent=0 // pred_fallthru
    _

</llo_original>
